<compile_context>
chip_gen: v7x
topology: tpu7x:2x2x1
jax: 0.10.0
libtpu: 0.0.40
codegen_flags: <defaults>
</compile_context>

<pallas_src>
import functools
import math

import jax
import jax.numpy as jnp
from jax import lax
from jax.experimental import pallas as pl
from jax.experimental.pallas import tpu as pltpu

SAFE_LOG_EPS = 1e-8                      # safe_log(x) := log(x + 1e-8)
_HALF_LOG_2PI = 0.5 * math.log(2.0 * math.pi)
_INV_SQRT2 = 1.0 / math.sqrt(2.0)

_LANE = 128
_SUBLANE = 8
_MAX_TILE_ROWS = 1024                    # 1024x128 f32 = 512 KiB per stream per block


def _lognormal_nll_kernel(logits_ref, y_ref, out_ref, *, tile_r, n_valid, needs_mask):
    """One row-tile of LogNormal NLL, reduced to an (8, 128) partial-sum slab.

    logits_ref : (2, tile_r, 128)  row 0 = mu, row 1 = pre_log_sigma
    y_ref      : (2, tile_r, 128)  row 0 = t_true (>0), row 1 = e_true (0/1)
    out_ref    : (1, 8, 128)       per-program partial sums
    """
    mu = logits_ref[0]
    pls = logits_ref[1]
    t = y_ref[0]
    e = y_ref[1]

    # sigma = exp(min(softplus(pls) - 0.5, 10))  (+1e-8 dropped: < 2e-8 relative)
    log_sigma = jnp.minimum(jax.nn.softplus(pls) - 0.5, 10.0)
    inv_sigma = jnp.exp(-log_sigma)          # one exp replaces exp + log + divide

    log_t = jnp.log(t)
    z = (log_t - mu) * inv_sigma

    # LogNormal CDF -> survival -> safe_log (torch-faithful formulation).
    # TODO(synk): lax.erfc would avoid the f32 tail cancellation of 1-cdf (and
    # save one VPU op), but the torch reference saturates at log(1e-8) the same
    # way; keep lax.erf for guaranteed Mosaic lowering.
    cdf = 0.5 * (1.0 + lax.erf(z * _INV_SQRT2))
    log_survival = jnp.log(1.0 - cdf + SAFE_LOG_EPS)

    # LogNormal log_prob: -log t - log sigma - 0.5*log(2*pi) - 0.5*z^2
    log_pdf = -log_t - log_sigma - _HALF_LOG_2PI - 0.5 * z * z

    nll = -((1.0 - e) * log_survival + e * log_pdf)

    if needs_mask:
        # Zero out padded elements (global flat index >= n_valid).
        pid = pl.program_id(0)
        row = lax.broadcasted_iota(jnp.int32, (tile_r, _LANE), 0)
        lane = lax.broadcasted_iota(jnp.int32, (tile_r, _LANE), 1)
        flat = (pid * tile_r + row) * _LANE + lane
        nll = jnp.where(flat < n_valid, nll, 0.0)

    # Per-block reduction: pure VPU vreg adds down to one (8, 128) slab; the
    # single cross-lane reduce happens once in the wrapper on all partials.
    out_ref[0] = jnp.sum(nll.reshape(tile_r // _SUBLANE, _SUBLANE, _LANE), axis=0)


def likelihood_lognormal(logits, y_true, reduction="mean", lam=0.0):
    """JAX wrapper matching LikelihoodLogNormal.forward with default hyper-params.

    logits: (N, 2) -> [:, 0] = mu, [:, 1] = pre_log_sigma
    y_true: (N, 2) -> [:, 0] = t_true (>0), [:, 1] = e_true (0/1)
    Returns a scalar (mean or sum of the per-sample NLL).
    """
    assert reduction in ("mean", "sum")
    n = logits.shape[0]

    # Lane/sublane-dense layout and tiling.
    rows = -(-n // _LANE)                         # ceil(N / 128)
    rows = -(-rows // _SUBLANE) * _SUBLANE        # round up to a multiple of 8
    tile_r = min(_MAX_TILE_ROWS, rows)            # rows per grid step (mult. of 8)
    rows = -(-rows // tile_r) * tile_r            # round rows up to tile multiple
    num_blocks = rows // tile_r
    n_padded = rows * _LANE

    # Two transposed streams instead of four column slices.
    logits_t = logits.astype(jnp.float32).T       # (2, N): [mu; pre_log_sigma]
    y_t = y_true.astype(jnp.float32).T            # (2, N): [t_true; e_true]
    pad = n_padded - n
    if pad:
        logits_t = jnp.pad(logits_t, ((0, 0), (0, pad)))
        y_t = jnp.pad(y_t, ((0, 0), (0, pad)), constant_values=1.0)  # t=1 keeps log finite
    logits_t = logits_t.reshape(2, rows, _LANE)
    y_t = y_t.reshape(2, rows, _LANE)

    kernel = functools.partial(
        _lognormal_nll_kernel, tile_r=tile_r, n_valid=n, needs_mask=(pad != 0))

    in_spec = pl.BlockSpec((2, tile_r, _LANE), lambda i: (0, i, 0))
    partials = pl.pallas_call(
        kernel,
        out_shape=jax.ShapeDtypeStruct((num_blocks, _SUBLANE, _LANE), jnp.float32),
        grid=(num_blocks,),
        in_specs=[in_spec, in_spec],
        out_specs=pl.BlockSpec((1, _SUBLANE, _LANE), lambda i: (i, 0, 0)),
        compiler_params=pltpu.CompilerParams(
            dimension_semantics=("parallel",),        # megacore-shardable on v7x
            vmem_limit_bytes=32 * 1024 * 1024),
    )(logits_t, y_t)

    nll = jnp.sum(partials)                       # tiny cross-block reduce
    if reduction == "mean":
        nll = nll / n

    # lam == 0.0 (module default) => cal_loss = 0, so loss is just the NLL.
    # TODO(synk): x-cal / KM calibration losses (lam > 0) need lifelines'
    # KaplanMeierFitter, torch.unique and data-dependent boolean indexing;
    # not implemented.
    return nll


def _reference_nll(logits, y_true, reduction="mean"):
    """Pure-JAX reference following the torch formula literally."""
    mu = logits[:, 0].astype(jnp.float32)
    pls = logits[:, 1].astype(jnp.float32)
    t = y_true[:, 0].astype(jnp.float32)
    e = y_true[:, 1].astype(jnp.float32)

    log_sigma = jnp.minimum(jax.nn.softplus(pls) - 0.5, 10.0)
    sigma = jnp.exp(log_sigma) + 1e-8
    log_t = jnp.log(t)
    z = (log_t - mu) / sigma
    cdf = 0.5 * (1.0 + lax.erf(z * _INV_SQRT2))
    log_survival = jnp.log(1.0 - cdf + SAFE_LOG_EPS)
    log_pdf = -log_t - jnp.log(sigma) - _HALF_LOG_2PI - 0.5 * z * z
    nll = -((1.0 - e) * log_survival + e * log_pdf)
    return jnp.mean(nll) if reduction == "mean" else jnp.sum(nll)


if __name__ == "__main__":
    key = jax.random.PRNGKey(0)
    k_logits, k_t, k_e = jax.random.split(key, 3)

    N = 200  # deliberately not a multiple of 128 to exercise the padding/mask path

    # logits[:, 0] = mu, logits[:, 1] = pre_log_sigma (moderate scale keeps z small)
    logits = 0.3 * jax.random.normal(k_logits, (N, 2), dtype=jnp.float32)

    # t_true must be strictly positive (LogNormal support); e_true in {0, 1}.
    t_true = jnp.exp(0.4 * jax.random.normal(k_t, (N,), dtype=jnp.float32)) + 0.2
    e_true = jax.random.bernoulli(k_e, 0.6, (N,)).astype(jnp.float32)
    y_true = jnp.stack([t_true, e_true], axis=1)

    loss = likelihood_lognormal(logits, y_true, reduction="mean", lam=0.0)
    loss = jax.block_until_ready(loss)
    ref = jax.block_until_ready(_reference_nll(logits, y_true, reduction="mean"))
    assert jnp.allclose(loss, ref, rtol=1e-5, atol=1e-5), (loss, ref)

    loss_sum = jax.block_until_ready(likelihood_lognormal(logits, y_true, reduction="sum"))
    ref_sum = jax.block_until_ready(_reference_nll(logits, y_true, reduction="sum"))
    assert jnp.allclose(loss_sum, ref_sum, rtol=1e-5, atol=1e-4), (loss_sum, ref_sum)

    print("KERNEL_OK")
</pallas_src>

<mosaic_0001>
module attributes {stable_mosaic.version = 11 : i64} {
  func.func @_lognormal_nll_kernel(%arg0: i32, %arg1: memref<2x8x128xf32, #tpu.memory_space<vmem>>, %arg2: memref<2x8x128xf32, #tpu.memory_space<vmem>>, %arg3: memref<1x8x128xf32, #tpu.memory_space<vmem>>) attributes {dimension_semantics = [#tpu.dimension_semantics<parallel>], iteration_bounds = array<i64: 1>, scalar_prefetch = 0 : i64, scratch_operands = 0 : i64, tpu.core_type = #tpu.core_type<tc>, window_params = [{transform_indices = @transform_0, window_bounds = array<i64: 2, 8, 128>}, {transform_indices = @transform_1, window_bounds = array<i64: 2, 8, 128>}, {transform_indices = @transform_2, window_bounds = array<i64: 1, 8, 128>}]} {
    %c0 = arith.constant 0 : index
    %c0_0 = arith.constant 0 : index
    %c0_1 = arith.constant 0 : index
    %0 = vector.load %arg1[%c0, %c0_0, %c0_1] : memref<2x8x128xf32, #tpu.memory_space<vmem>>, vector<1x8x128xf32>
    %1 = vector.shape_cast %0 : vector<1x8x128xf32> to vector<8x128xf32>
    %c1 = arith.constant 1 : index
    %c0_2 = arith.constant 0 : index
    %c0_3 = arith.constant 0 : index
    %2 = vector.load %arg1[%c1, %c0_2, %c0_3] : memref<2x8x128xf32, #tpu.memory_space<vmem>>, vector<1x8x128xf32>
    %3 = vector.shape_cast %2 : vector<1x8x128xf32> to vector<8x128xf32>
    %c0_4 = arith.constant 0 : index
    %c0_5 = arith.constant 0 : index
    %c0_6 = arith.constant 0 : index
    %4 = vector.load %arg2[%c0_4, %c0_5, %c0_6] : memref<2x8x128xf32, #tpu.memory_space<vmem>>, vector<1x8x128xf32>
    %5 = vector.shape_cast %4 : vector<1x8x128xf32> to vector<8x128xf32>
    %c1_7 = arith.constant 1 : index
    %c0_8 = arith.constant 0 : index
    %c0_9 = arith.constant 0 : index
    %6 = vector.load %arg2[%c1_7, %c0_8, %c0_9] : memref<2x8x128xf32, #tpu.memory_space<vmem>>, vector<1x8x128xf32>
    %7 = vector.shape_cast %6 : vector<1x8x128xf32> to vector<8x128xf32>
    %cst = arith.constant 0.000000e+00 : f32
    %8 = vector.broadcast %cst : f32 to vector<8x128xf32>
    %9 = arith.maximumf %3, %8 : vector<8x128xf32>
    %10 = vector.broadcast %cst : f32 to vector<8x128xf32>
    %11 = arith.subf %3, %10 : vector<8x128xf32>
    %12 = arith.cmpf one, %11, %11 : vector<8x128xf32>
    %13 = vector.broadcast %cst : f32 to vector<8x128xf32>
    %14 = arith.addf %3, %13 : vector<8x128xf32>
    %15 = math.absf %11 : vector<8x128xf32>
    %cst_10 = arith.constant 0.000000e+00 : f32
    %16 = vector.broadcast %cst_10 : f32 to vector<8x128xf32>
    %17 = arith.subf %16, %15 : vector<8x128xf32>
    %18 = math.exp %17 : vector<8x128xf32>
    %19 = math.log1p %18 : vector<8x128xf32>
    %20 = arith.addf %9, %19 : vector<8x128xf32>
    %21 = arith.select %12, %14, %20 : vector<8x128xi1>, vector<8x128xf32>
    %cst_11 = arith.constant 5.000000e-01 : f32
    %22 = vector.broadcast %cst_11 : f32 to vector<8x128xf32>
    %23 = arith.subf %21, %22 : vector<8x128xf32>
    %cst_12 = arith.constant 1.000000e+01 : f32
    %24 = vector.broadcast %cst_12 : f32 to vector<8x128xf32>
    %25 = arith.minimumf %23, %24 : vector<8x128xf32>
    %cst_13 = arith.constant 0.000000e+00 : f32
    %26 = vector.broadcast %cst_13 : f32 to vector<8x128xf32>
    %27 = arith.subf %26, %25 : vector<8x128xf32>
    %28 = math.exp %27 : vector<8x128xf32>
    %29 = math.log %5 : vector<8x128xf32>
    %30 = arith.subf %29, %1 : vector<8x128xf32>
    %31 = arith.mulf %30, %28 : vector<8x128xf32>
    %cst_14 = arith.constant 0.707106769 : f32
    %32 = vector.broadcast %cst_14 : f32 to vector<8x128xf32>
    %33 = arith.mulf %31, %32 : vector<8x128xf32>
    %34 = math.erf %33 : vector<8x128xf32>
    %cst_15 = arith.constant 1.000000e+00 : f32
    %35 = vector.broadcast %cst_15 : f32 to vector<8x128xf32>
    %36 = arith.addf %35, %34 : vector<8x128xf32>
    %cst_16 = arith.constant 5.000000e-01 : f32
    %37 = vector.broadcast %cst_16 : f32 to vector<8x128xf32>
    %38 = arith.mulf %37, %36 : vector<8x128xf32>
    %cst_17 = arith.constant 1.000000e+00 : f32
    %39 = vector.broadcast %cst_17 : f32 to vector<8x128xf32>
    %40 = arith.subf %39, %38 : vector<8x128xf32>
    %cst_18 = arith.constant 9.99999993E-9 : f32
    %41 = vector.broadcast %cst_18 : f32 to vector<8x128xf32>
    %42 = arith.addf %40, %41 : vector<8x128xf32>
    %43 = math.log %42 : vector<8x128xf32>
    %cst_19 = arith.constant 0.000000e+00 : f32
    %44 = vector.broadcast %cst_19 : f32 to vector<8x128xf32>
    %45 = arith.subf %44, %29 : vector<8x128xf32>
    %46 = arith.subf %45, %25 : vector<8x128xf32>
    %cst_20 = arith.constant 0.918938517 : f32
    %47 = vector.broadcast %cst_20 : f32 to vector<8x128xf32>
    %48 = arith.subf %46, %47 : vector<8x128xf32>
    %cst_21 = arith.constant 5.000000e-01 : f32
    %49 = vector.broadcast %cst_21 : f32 to vector<8x128xf32>
    %50 = arith.mulf %49, %31 : vector<8x128xf32>
    %51 = arith.mulf %50, %31 : vector<8x128xf32>
    %52 = arith.subf %48, %51 : vector<8x128xf32>
    %cst_22 = arith.constant 1.000000e+00 : f32
    %53 = vector.broadcast %cst_22 : f32 to vector<8x128xf32>
    %54 = arith.subf %53, %7 : vector<8x128xf32>
    %55 = arith.mulf %54, %43 : vector<8x128xf32>
    %56 = arith.mulf %7, %52 : vector<8x128xf32>
    %57 = arith.addf %55, %56 : vector<8x128xf32>
    %cst_23 = arith.constant 0.000000e+00 : f32
    %58 = vector.broadcast %cst_23 : f32 to vector<8x128xf32>
    %59 = arith.subf %58, %57 : vector<8x128xf32>
    %60 = tpu.iota {dimensions = array<i32: 0>} : vector<8x128xi32>
    %61 = tpu.iota {dimensions = array<i32: 1>} : vector<8x128xi32>
    %c8_i32 = arith.constant 8 : i32
    %62 = arith.muli %arg0, %c8_i32 : i32
    %63 = vector.broadcast %62 : i32 to vector<8x128xi32>
    %64 = arith.addi %63, %60 : vector<8x128xi32>
    %c128_i32 = arith.constant 128 : i32
    %65 = vector.broadcast %c128_i32 : i32 to vector<8x128xi32>
    %66 = arith.muli %64, %65 : vector<8x128xi32>
    %67 = arith.addi %66, %61 : vector<8x128xi32>
    %c200_i32 = arith.constant 200 : i32
    %68 = vector.broadcast %c200_i32 : i32 to vector<8x128xi32>
    %69 = arith.cmpi slt, %67, %68 : vector<8x128xi32>
    %cst_24 = arith.constant 0.000000e+00 : f32
    %70 = vector.broadcast %cst_24 : f32 to vector<8x128xf32>
    %71 = arith.select %69, %59, %70 : vector<8x128xi1>, vector<8x128xf32>
    %72 = vector.shape_cast %71 : vector<8x128xf32> to vector<1x8x128xf32>
    %cst_25 = arith.constant dense<0.000000e+00> : vector<8x128xf32>
    %73 = vector.multi_reduction <add>, %72, %cst_25 [0] : vector<1x8x128xf32> to vector<8x128xf32>
    %c0_26 = arith.constant 0 : index
    %c0_27 = arith.constant 0 : index
    %c0_28 = arith.constant 0 : index
    %74 = vector.load %arg3[%c0_26, %c0_27, %c0_28] : memref<1x8x128xf32, #tpu.memory_space<vmem>>, vector<1x8x128xf32>
    %75 = vector.shape_cast %74 : vector<1x8x128xf32> to vector<8x128xf32>
    %76 = vector.shape_cast %73 : vector<8x128xf32> to vector<1x8x128xf32>
    tpu.vector_store %arg3[%c0_26, %c0_27, %c0_28], %76 {strides = array<i32>} : memref<1x8x128xf32, #tpu.memory_space<vmem>>, vector<1x8x128xf32>,
    return
  }
  func.func @transform_0(%arg0: i32) -> (i32, i32, i32) {
    %c0_i32 = arith.constant 0 : i32
    %c0_i32_0 = arith.constant 0 : i32
    %c0_i32_1 = arith.constant 0 : i32
    return %c0_i32, %arg0, %c0_i32_0 : i32, i32, i32
  }
  func.func @transform_1(%arg0: i32) -> (i32, i32, i32) {
    %c0_i32 = arith.constant 0 : i32
    %c0_i32_0 = arith.constant 0 : i32
    %c0_i32_1 = arith.constant 0 : i32
    return %c0_i32, %arg0, %c0_i32_0 : i32, i32, i32
  }
  func.func @transform_2(%arg0: i32) -> (i32, i32, i32) {
    %c0_i32 = arith.constant 0 : i32
    %c0_i32_0 = arith.constant 0 : i32
    %c0_i32_1 = arith.constant 0 : i32
    return %arg0, %c0_i32, %c0_i32_0 : i32, i32, i32
  }
}

</mosaic_0001>

<llo_original>
// kernel: tpu_custom_call.1
$region0: #{tpu_custom_call.1}
  #allocation0 [shape = 'u32[]', space=smem, size = 0x4, offset = 0x4, fixed_abs, tag = 'smem constant byte address 0x4 - core index']
  #allocation1 [shape = 'u32[144,128]{1,0:T(1,128)}', space=vmem, size = 0x12000, scoped, tag = 'internal scratch']
  %s0 = inlined_call_operand.hbm [shape: f32[2,8,128], index: 0, kind: input, shape index: {}]
  %s1 = inlined_call_operand.hbm [shape: f32[2,8,128], index: 1, kind: input, shape index: {}]
  %s2 = inlined_call_operand.hbm [shape: f32[1,8,128], index: 2, kind: output, shape index: {}]
  %s3 = sld [smem:[#allocation0]]
  $region26: #{tpu_custom_call.1} parent=0
    _
  %s5 = ssub.s32 1, %s3
  %s6 = scalar_select 0, %s5, %s3
  $region1: #{tpu_custom_call.1} parent=0
    #allocation2 [shape = 'u8[8192]{0}', space=vmem, size = 0x2000, scoped, tag = 'input window, operand 0, single buffered']
    #allocation3 [shape = 's32[1]{0}', space=sflag, size = 0x4, scoped, tag = 'scoped memory for tpu_custom_call.1']
    #allocation4 [shape = 's32[1]{0}', space=sflag, size = 0x4, scoped, tag = 'scoped memory for tpu_custom_call.1']
    #allocation5 [shape = 'u8[8192]{0}', space=vmem, size = 0x2000, scoped, tag = 'input window, operand 1, single buffered']
    #allocation6 [shape = 's32[1]{0}', space=sflag, size = 0x4, scoped, tag = 'scoped memory for tpu_custom_call.1']
    #allocation7 [shape = 'u8[4096]{0}', space=vmem, size = 0x1000, scoped, tag = 'output window, operand 0, single buffered']
    %7 = vsyncpa [#allocation3], 0
    %8 = vsyncpa [#allocation6], 0
    %9 = vsyncpa [#allocation4], 0
    // Predicated region
    $region2: #{tpu_custom_call.1} parent=1 // pred_check
      _
    $region3: #{tpu_custom_call.1} parent=1 // pred_check_branch
      %11 = sbr.rel (0) target = $region5
    $region4: #{tpu_custom_call.1} parent=1 // pred_region
      %s13 = ssub.s32 256, 256
      %14 = vsyncadd [#allocation3], %s13
      %s15 = sshll.u32 [#allocation2], 4
      %s16 = int_to_ptr.vmem [resolvable:$true] %s15
      %21 = dma.hbm_to_vmem [thread:$0]  %s0, 256, %s16, [#allocation3], 128, 128, 8
    $region5: #{tpu_custom_call.1} parent=1 // pred_fallthru
      _
    // Predicated region
    $region6: #{tpu_custom_call.1} parent=1 // pred_check
      _
    $region7: #{tpu_custom_call.1} parent=1 // pred_check_branch
      %23 = sbr.rel (0) target = $region9
    $region8: #{tpu_custom_call.1} parent=1 // pred_region
      %s25 = ssub.s32 256, 256
      %26 = vsyncadd [#allocation6], %s25
      %s27 = sshll.u32 [#allocation5], 4
      %s28 = int_to_ptr.vmem [resolvable:$true] %s27
      %33 = dma.hbm_to_vmem [thread:$0]  %s1, 256, %s28, [#allocation6], 128, 128, 8
    $region9: #{tpu_custom_call.1} parent=1 // pred_fallthru
      _
    // Predicated region
    $region10: #{tpu_custom_call.1} parent=1 // pred_check
      _
    $region11: #{tpu_custom_call.1} parent=1 // pred_check_branch
      %35 = sbr.rel (0) target = $region13
    $region12: #{tpu_custom_call.1} parent=1 // pred_region
      %36 = dma.done [#allocation3], 256
    $region13: #{tpu_custom_call.1} parent=1 // pred_fallthru
      _
    // Predicated region
    $region14: #{tpu_custom_call.1} parent=1 // pred_check
      _
    $region15: #{tpu_custom_call.1} parent=1 // pred_check_branch
      %38 = sbr.rel (0) target = $region17
    $region16: #{tpu_custom_call.1} parent=1 // pred_region
      %39 = dma.done [#allocation6], 256
    $region17: #{tpu_custom_call.1} parent=1 // pred_fallthru
      _
    %v40 = vld [vmem:[#allocation2] sm:$0xff]
    %s41 = scalar_lea.vmem [#allocation2], 8
    %v42 = vld [vmem:[%s41] sm:$0xff]
    %v43 = vld [vmem:[#allocation5] sm:$0xff]
    %s44 = scalar_lea.vmem [#allocation5], 8
    %v45 = vld [vmem:[%s44] sm:$0xff]
    %v46 = vmax.f32 %v42, 0.0
    %vm47 = vcmp.ne.f32.partialorder %v42, %v42
    %v48 = vadd.f32 %v42, 0.0
    %v49 = vand.u32 2147483647, %v42
    %v50 = vsub.f32 0.0, %v49
    %v51 = vmul.f32 %v50, 1.442695
    %v52 = vpow.pop %v51
    %v53 = vadd.f32 %v52, 1.0
    %v54 = vlog2.pop %v53
    %v55 = vmul.f32 %v54, 0.6931472
    %v56 = vmul.f32 -0.5, %v52
    %v57 = vadd.f32 %v56, 1.0
    %v58 = vmul.f32 %v57, %v52
    %v59 = vand.u32 2147483647, %v52
    %vm60 = vcmp.lt.f32.partialorder %v59, 0.0004427343
    %v61 = vsel %vm60, %v58, %v55
    %v62 = vadd.f32 %v46, %v61
    %v63 = vsel %vm47, %v48, %v62
    %v64 = vsub.f32 %v63, 0.5
    %v65 = vmin.f32 %v64, 10.0
    %v66 = vsub.f32 0.0, %v65
    %v67 = vmul.f32 %v66, 1.442695
    %v68 = vpow.pop %v67
    %v69 = vlog2.pop %v43
    %v70 = vmul.f32 %v69, 0.6931472
    %v71 = vsub.f32 %v70, %v40
    %v72 = vmul.f32 %v71, %v68
    %v73 = vmul.f32 %v72, 0.70710677
    %v74 = verf.f32.pop %v73
    %v75 = vadd.f32 %v74, 1.0
    %v76 = vmul.f32 %v75, 0.5
    %v77 = vsub.f32 1.0, %v76
    %v78 = vadd.f32 %v77, 1e-08
    %v79 = vlog2.pop %v78
    %v80 = vmul.f32 %v79, 0.6931472
    %v81 = vsub.f32 0.0, %v70
    %v82 = vsub.f32 %v81, %v65
    %v83 = vsub.f32 %v82, 0.9189385
    %v84 = vmul.f32 %v72, 0.5
    %v85 = vmul.f32 %v84, %v72
    %v86 = vsub.f32 %v83, %v85
    %v87 = vsub.f32 1.0, %v45
    %v88 = vmul.f32 %v87, %v80
    %v89 = vmul.f32 %v45, %v86
    %v90 = vadd.f32 %v88, %v89
    %v91 = vsub.f32 0.0, %v90
    %v92 = vlaneseq
    %v93 = vshrl.u32 %v92, 7
    %v94 = vlaneseq
    %v95 = vand.u32 %v94, 127
    %s96 = smul.u32 0, 8
    %v97 = vstv %s96
    %v98 = vadd.s32 %v97, %v93
    %v99 = vmul.u32 %v98, 128
    %v100 = vadd.s32 %v99, %v95
    %vm101 = vcmp.lt.s32.totalorder %v100, 200
    %v102 = vsel %vm101, %v91, 0.0
    %v103 = vadd.f32 %v102, 0.0
    %104 = vst [vmem:[#allocation7] sm:$0xff] %v103
    // Predicated region
    $region18: #{tpu_custom_call.1} parent=1 // pred_check
      _
    $region19: #{tpu_custom_call.1} parent=1 // pred_check_branch
      %106 = sbr.rel (0) target = $region21
    $region20: #{tpu_custom_call.1} parent=1 // pred_region
      %s108 = ssub.s32 128, 128
      %109 = vsyncadd [#allocation4], %s108
      %s111 = sshll.u32 [#allocation7], 4
      %s112 = int_to_ptr.vmem [resolvable:$true] %s111
      %114 = dma.vmem_to_hbm [thread:$0]  %s112, 128, %s2, [#allocation4]
    $region21: #{tpu_custom_call.1} parent=1 // pred_fallthru
      _
    // Predicated region
    $region22: #{tpu_custom_call.1} parent=1 // pred_check
      _
    $region23: #{tpu_custom_call.1} parent=1 // pred_check_branch
      %116 = sbr.rel (0) target = $region25
    $region24: #{tpu_custom_call.1} parent=1 // pred_region
      %117 = dma.done [#allocation4], 128
    $region25: #{tpu_custom_call.1} parent=1 // pred_fallthru
      _
    %118 = vsyncpa [#allocation3], 1
    %119 = vsyncpa [#allocation6], 1
    %120 = vsyncpa [#allocation4], 1

</llo_original>
